<compile_context>
chip_gen: v7x
topology: tpu7x:2x2x1
jax: 0.10.0
libtpu: 0.0.40
codegen_flags: <defaults>
</compile_context>

<pallas_src>
import numpy as np
import jax
import jax.numpy as jnp
from jax.experimental import pallas as pl
from jax.experimental.pallas import tpu as pltpu


# -----------------------------------------------------------------------------
# Small constant tables.
# -----------------------------------------------------------------------------
def _make_tap_masks(H, W):
    """masks[t, h*W+w] = 1 iff 3x3 tap t (dh, dw = t//3-1, t%3-1) reads an
    in-bounds pixel at (h+dh, w+dw).  Zeroing the wrap-around lanes of the
    rolls implements padding=1 of the depthwise conv and also neutralizes any
    cross-image leak when several images share the lane axis."""
    hw = np.arange(H * W)
    h, w = hw // W, hw % W
    masks = np.zeros((9, H * W), np.float32)
    for kh in range(3):
        for kw in range(3):
            dh, dw = kh - 1, kw - 1
            ok = (h + dh >= 0) & (h + dh < H) & (w + dw >= 0) & (w + dw < W)
            masks[kh * 3 + kw] = ok.astype(np.float32)
    return masks


def _make_pool_select(H, W, Bn):
    """0/1 matrix (Bn*HW, Bn*HoWo): picks each image's even-(h, w) anchors and
    compacts them into a lane-dense downsampled slab (block-diagonal over the
    Bn images batched on the lane axis).  Kept f32 so the selection is exact."""
    Ho, Wo = H // 2, W // 2
    sel = np.zeros((H * W, Ho * Wo), np.float32)
    for i in range(Ho):
        for j in range(Wo):
            sel[(2 * i) * W + (2 * j), i * Wo + j] = 1.0
    return np.kron(np.eye(Bn, dtype=np.float32), sel)


# -----------------------------------------------------------------------------
# Wrapper: NCHW in, NCHW out (matching the PyTorch module).
# -----------------------------------------------------------------------------
def pepx_downsample(x_nchw, kp, block_images=None):
    N, Cin, H, W = x_nchw.shape
    assert H % 2 == 0 and W % 2 == 0, "2x2/stride-2 pool assumes even H, W"
    HW, Ho, Wo = H * W, H // 2, W // 2
    HoWo = Ho * Wo
    Cout = kp["w1"].shape[0]

    # Images per grid step: enough to make the pooled output slab lane-dense.
    Bn = block_images if block_images is not None else max(1, -(-128 // HoWo))
    Nb = -(-N // Bn)
    Npad = Nb * Bn
    if Npad != N:
        x_nchw = jnp.concatenate(
            [x_nchw, jnp.zeros((Npad - N, Cin, H, W), x_nchw.dtype)], axis=0)

    L = Bn * HW       # lanes per step, input/activation side
    Lo = Bn * HoWo    # lanes per step, pooled output side (>= 128)

    # Feature-major, image-batched, bf16 input slabs: (Nb, Cin, Bn*HW).
    x_flat = (x_nchw.reshape(Nb, Bn, Cin, HW)
                    .transpose(0, 2, 1, 3)
                    .reshape(Nb, Cin, L)
                    .astype(jnp.bfloat16))

    # Fold depthwise tap weights into the Bn-tiled edge masks: (9, Cout, L).
    mask_b = np.tile(_make_tap_masks(H, W), (1, Bn))                   # (9, L)
    wm = jnp.asarray(mask_b)[:, None, :] * kp["wd"].T[:, :, None]      # (9, Cout, L)

    sel = jnp.asarray(_make_pool_select(H, W, Bn))                     # (L, Lo)

    def kernel(x_ref, w1_ref, b1_ref, wm_ref, bd_ref, w2_ref, b2_ref,
               sel_ref, o_ref):
        f32, bf16 = jnp.float32, jnp.bfloat16
        x = x_ref[0]                                                   # (Cin, L) bf16

        # fused projection -> expansion (two 1x1 convs, no ReLU between), ReLU
        e = jnp.dot(w1_ref[...], x, preferred_element_type=f32) + b1_ref[...]
        e = jnp.maximum(e, 0.0)                                        # (Cout, L) f32

        # depthwise 3x3, padding=1: 8 lane rotations + per-tap FMA against the
        # prefolded weight*mask constants; init with the shift-free center tap.
        acc = e * wm_ref[4]
        for kh in range(3):
            for kw in range(3):
                t = kh * 3 + kw
                if t == 4:
                    continue
                s = (kh - 1) * W + (kw - 1)                  # flat tap offset
                shifted = pltpu.roll(e, (-s) % L, axis=1)    # shifted[:,p] = e[:,p+s]
                acc = acc + shifted * wm_ref[t]
        d = jnp.maximum(acc + bd_ref[...], 0.0)                        # (Cout, L)

        # fused second_projection -> extension (1x1), ReLU
        o = jnp.dot(w2_ref[...], d.astype(bf16),
                    preferred_element_type=f32) + b2_ref[...]          # (Cout, L)
        o = jnp.maximum(o, 0.0)

        # 2x2 / stride-2 max-pool: two rolled maxes put every window's max at
        # its even-(h, w) anchor (anchors never cross image boundaries); one
        # 0/1 selector matmul compacts the anchors into a lane-dense slab.
        m = jnp.maximum(o, pltpu.roll(o, L - 1, axis=1))   # pair max along w
        m = jnp.maximum(m, pltpu.roll(m, L - W, axis=1))   # pair max along h
        o_ref[0] = jnp.dot(m, sel_ref[...],
                           preferred_element_type=f32).astype(o_ref.dtype)

    def full(shape):
        zeros = (0,) * len(shape)
        return pl.BlockSpec(shape, lambda n: zeros)

    out_flat = pl.pallas_call(
        kernel,
        out_shape=jax.ShapeDtypeStruct((Nb, Cout, Lo), jnp.float32),
        grid=(Nb,),
        in_specs=[
            pl.BlockSpec((1, Cin, L), lambda n: (n, 0, 0)),  # x: Bn images / step
            full((Cout, Cin)), full((Cout, 1)),              # fused proj+exp  W1, b1
            full((9, Cout, L)), full((Cout, 1)),             # depthwise wd*mask, bias
            full((Cout, Cout)), full((Cout, 1)),             # fused sproj+ext W2, b2
            full((L, Lo)),                                   # pool anchor selector
        ],
        out_specs=pl.BlockSpec((1, Cout, Lo), lambda n: (n, 0, 0)),
        compiler_params=pltpu.CompilerParams(dimension_semantics=("parallel",)),
    )(x_flat, kp["w1"], kp["b1"], wm, kp["bd"], kp["w2"], kp["b2"], sel)

    # (Nb, Cout, Bn*HoWo) -> NCHW, drop batch padding.
    out = (out_flat.reshape(Nb, Cout, Bn, Ho, Wo)
                   .transpose(0, 2, 1, 3, 4)
                   .reshape(Npad, Cout, Ho, Wo))
    return out[:N]


# -----------------------------------------------------------------------------
# Pure-JAX reference (mirrors the PyTorch forward), used for verification.
# -----------------------------------------------------------------------------
def reference_forward(x, tp):
    dn = ("NCHW", "OIHW", "NCHW")

    def conv1x1(y, w, b):
        y = jax.lax.conv_general_dilated(y, w, (1, 1), "VALID", dimension_numbers=dn)
        return y + b[None, :, None, None]

    Cout = tp["W_dw"].shape[0]
    y = conv1x1(x, tp["W_proj"], tp["b_proj"])
    y = conv1x1(y, tp["W_exp"], tp["b_exp"])
    y = jax.nn.relu(y)
    y = jax.lax.conv_general_dilated(y, tp["W_dw"], (1, 1), ((1, 1), (1, 1)),
                                     dimension_numbers=dn,
                                     feature_group_count=Cout)
    y = y + tp["b_dw"][None, :, None, None]
    y = jax.nn.relu(y)
    y = conv1x1(y, tp["W_sp"], tp["b_sp"])
    y = conv1x1(y, tp["W_ext"], tp["b_ext"])
    y = jax.nn.relu(y)
    y = jax.lax.reduce_window(y, -jnp.inf, jax.lax.max,
                              (1, 1, 2, 2), (1, 1, 2, 2), "VALID")
    return y


# -----------------------------------------------------------------------------
# Deterministic parameters (PyTorch __init__ shapes) + fused kernel params.
# -----------------------------------------------------------------------------
def make_params(key, in_channels, out_channels, expansion_factor=4):
    hidden = int(out_channels / expansion_factor)
    ks = jax.random.split(key, 10)
    rnd = lambda k, shape, s: jax.random.normal(k, shape, jnp.float32) * s
    tp = {
        "W_proj": rnd(ks[0], (hidden, in_channels, 1, 1), 0.3),
        "b_proj": rnd(ks[1], (hidden,), 0.1),
        "W_exp":  rnd(ks[2], (out_channels, hidden, 1, 1), 0.3),
        "b_exp":  rnd(ks[3], (out_channels,), 0.1),
        "W_dw":   rnd(ks[4], (out_channels, 1, 3, 3), 0.3),
        "b_dw":   rnd(ks[5], (out_channels,), 0.1),
        "W_sp":   rnd(ks[6], (hidden, out_channels, 1, 1), 0.3),
        "b_sp":   rnd(ks[7], (hidden,), 0.1),
        "W_ext":  rnd(ks[8], (out_channels, hidden, 1, 1), 0.3),
        "b_ext":  rnd(ks[9], (out_channels,), 0.1),
    }
    # Fused, feature-major kernel parameters (exact fusion: no ReLU inside
    # each 1x1 pair).  Fusion is done in f32; only the final weights/activations
    # are bf16 (keep fused weights f32 if tighter accuracy is ever needed).
    Wp, We = tp["W_proj"][:, :, 0, 0], tp["W_exp"][:, :, 0, 0]
    Ws, Wx = tp["W_sp"][:, :, 0, 0], tp["W_ext"][:, :, 0, 0]
    W1 = We @ Wp                                   # (Cout, Cin)
    b1 = We @ tp["b_proj"] + tp["b_exp"]
    W2 = Wx @ Ws                                   # (Cout, Cout)
    b2 = Wx @ tp["b_sp"] + tp["b_ext"]
    kp = {
        "w1": W1.astype(jnp.bfloat16), "b1": b1[:, None],
        "w2": W2.astype(jnp.bfloat16), "b2": b2[:, None],
        "wd": tp["W_dw"][:, 0].reshape(out_channels, 9),   # (Cout, 9) f32 taps
        "bd": tp["b_dw"][:, None],
    }
    return tp, kp


if __name__ == "__main__":
    key = jax.random.PRNGKey(0)
    k_x, k_p = jax.random.split(key)

    N, Cin, Cout, H, W = 2, 4, 8, 16, 16
    x = jax.random.normal(k_x, (N, Cin, H, W), jnp.float32)

    tp, kp = make_params(k_p, Cin, Cout, expansion_factor=4)

    out = jax.block_until_ready(pepx_downsample(x, kp))
    ref = jax.block_until_ready(reference_forward(x, tp))

    # Tolerance accounts for the bf16 inputs of the two fused 1x1 matmuls
    # (f32 accumulation); depthwise / pooling arithmetic is exact f32.
    np.testing.assert_allclose(np.asarray(out), np.asarray(ref),
                               rtol=2e-2, atol=2e-2)
    assert out.shape == (N, Cout, H // 2, W // 2)
    print("KERNEL_OK")
</pallas_src>

<mosaic_0001>
module attributes {stable_mosaic.version = 11 : i64} {
  func.func @kernel(%arg0: i32, %arg1: memref<1x4x512xbf16, #tpu.memory_space<vmem>>, %arg2: memref<8x4xbf16, #tpu.memory_space<vmem>>, %arg3: memref<8x1xf32, #tpu.memory_space<vmem>>, %arg4: memref<9x8x512xf32, #tpu.memory_space<vmem>>, %arg5: memref<8x1xf32, #tpu.memory_space<vmem>>, %arg6: memref<8x8xbf16, #tpu.memory_space<vmem>>, %arg7: memref<8x1xf32, #tpu.memory_space<vmem>>, %arg8: memref<512x128xf32, #tpu.memory_space<vmem>>, %arg9: memref<1x8x128xf32, #tpu.memory_space<vmem>>) attributes {dimension_semantics = [#tpu.dimension_semantics<parallel>], iteration_bounds = array<i64: 1>, scalar_prefetch = 0 : i64, scratch_operands = 0 : i64, tpu.core_type = #tpu.core_type<tc>, window_params = [{transform_indices = @transform_0, window_bounds = array<i64: 1, 4, 512>}, {pipeline_mode = #tpu.pipeline_mode<synchronous>, transform_indices = @transform_1, window_bounds = array<i64: 8, 4>}, {pipeline_mode = #tpu.pipeline_mode<synchronous>, transform_indices = @transform_2, window_bounds = array<i64: 8, 1>}, {pipeline_mode = #tpu.pipeline_mode<synchronous>, transform_indices = @transform_3, window_bounds = array<i64: 9, 8, 512>}, {pipeline_mode = #tpu.pipeline_mode<synchronous>, transform_indices = @transform_4, window_bounds = array<i64: 8, 1>}, {pipeline_mode = #tpu.pipeline_mode<synchronous>, transform_indices = @transform_5, window_bounds = array<i64: 8, 8>}, {pipeline_mode = #tpu.pipeline_mode<synchronous>, transform_indices = @transform_6, window_bounds = array<i64: 8, 1>}, {pipeline_mode = #tpu.pipeline_mode<synchronous>, transform_indices = @transform_7, window_bounds = array<i64: 512, 128>}, {transform_indices = @transform_8, window_bounds = array<i64: 1, 8, 128>}]} {
    %c0 = arith.constant 0 : index
    %c0_0 = arith.constant 0 : index
    %c0_1 = arith.constant 0 : index
    %0 = vector.load %arg1[%c0, %c0_0, %c0_1] : memref<1x4x512xbf16, #tpu.memory_space<vmem>>, vector<1x4x512xbf16>
    %1 = vector.shape_cast %0 : vector<1x4x512xbf16> to vector<4x512xbf16>
    %c0_2 = arith.constant 0 : index
    %c0_3 = arith.constant 0 : index
    %2 = vector.load %arg2[%c0_2, %c0_3] : memref<8x4xbf16, #tpu.memory_space<vmem>>, vector<8x4xbf16>
    %cst = arith.constant dense<0.000000e+00> : vector<8x512xf32>
    %3 = tpu.matmul %2, %1, %cst {dimension_numbers = #tpu.dot_dimension_numbers<[1], [0], [0], [1], [0, 0, 1, 1], [], []>} : vector<8x4xbf16>, vector<4x512xbf16>, vector<8x512xf32> -> vector<8x512xf32>
    %c0_4 = arith.constant 0 : index
    %c0_5 = arith.constant 0 : index
    %4 = vector.load %arg3[%c0_4, %c0_5] : memref<8x1xf32, #tpu.memory_space<vmem>>, vector<8x1xf32>
    %5 = vector.broadcast %4 : vector<8x1xf32> to vector<8x512xf32>
    %6 = arith.addf %3, %5 : vector<8x512xf32>
    %cst_6 = arith.constant 0.000000e+00 : f32
    %7 = vector.broadcast %cst_6 : f32 to vector<8x512xf32>
    %8 = arith.maximumf %6, %7 : vector<8x512xf32>
    %c4 = arith.constant 4 : index
    %c0_7 = arith.constant 0 : index
    %c0_8 = arith.constant 0 : index
    %9 = vector.load %arg4[%c4, %c0_7, %c0_8] : memref<9x8x512xf32, #tpu.memory_space<vmem>>, vector<1x8x512xf32>
    %10 = vector.shape_cast %9 : vector<1x8x512xf32> to vector<8x512xf32>
    %11 = arith.mulf %8, %10 : vector<8x512xf32>
    %c17_i32 = arith.constant 17 : i32
    %12 = tpu.dynamic_rotate %8 by %c17_i32 dim 1 : vector<8x512xf32>, i32 -> vector<8x512xf32>
    %c0_9 = arith.constant 0 : index
    %c0_10 = arith.constant 0 : index
    %c0_11 = arith.constant 0 : index
    %13 = vector.load %arg4[%c0_9, %c0_10, %c0_11] : memref<9x8x512xf32, #tpu.memory_space<vmem>>, vector<1x8x512xf32>
    %14 = vector.shape_cast %13 : vector<1x8x512xf32> to vector<8x512xf32>
    %15 = arith.mulf %12, %14 : vector<8x512xf32>
    %16 = arith.addf %11, %15 : vector<8x512xf32>
    %c16_i32 = arith.constant 16 : i32
    %17 = tpu.dynamic_rotate %8 by %c16_i32 dim 1 : vector<8x512xf32>, i32 -> vector<8x512xf32>
    %c1 = arith.constant 1 : index
    %c0_12 = arith.constant 0 : index
    %c0_13 = arith.constant 0 : index
    %18 = vector.load %arg4[%c1, %c0_12, %c0_13] : memref<9x8x512xf32, #tpu.memory_space<vmem>>, vector<1x8x512xf32>
    %19 = vector.shape_cast %18 : vector<1x8x512xf32> to vector<8x512xf32>
    %20 = arith.mulf %17, %19 : vector<8x512xf32>
    %21 = arith.addf %16, %20 : vector<8x512xf32>
    %c15_i32 = arith.constant 15 : i32
    %22 = tpu.dynamic_rotate %8 by %c15_i32 dim 1 : vector<8x512xf32>, i32 -> vector<8x512xf32>
    %c2 = arith.constant 2 : index
    %c0_14 = arith.constant 0 : index
    %c0_15 = arith.constant 0 : index
    %23 = vector.load %arg4[%c2, %c0_14, %c0_15] : memref<9x8x512xf32, #tpu.memory_space<vmem>>, vector<1x8x512xf32>
    %24 = vector.shape_cast %23 : vector<1x8x512xf32> to vector<8x512xf32>
    %25 = arith.mulf %22, %24 : vector<8x512xf32>
    %26 = arith.addf %21, %25 : vector<8x512xf32>
    %c1_i32 = arith.constant 1 : i32
    %27 = tpu.dynamic_rotate %8 by %c1_i32 dim 1 : vector<8x512xf32>, i32 -> vector<8x512xf32>
    %c3 = arith.constant 3 : index
    %c0_16 = arith.constant 0 : index
    %c0_17 = arith.constant 0 : index
    %28 = vector.load %arg4[%c3, %c0_16, %c0_17] : memref<9x8x512xf32, #tpu.memory_space<vmem>>, vector<1x8x512xf32>
    %29 = vector.shape_cast %28 : vector<1x8x512xf32> to vector<8x512xf32>
    %30 = arith.mulf %27, %29 : vector<8x512xf32>
    %31 = arith.addf %26, %30 : vector<8x512xf32>
    %c511_i32 = arith.constant 511 : i32
    %32 = tpu.dynamic_rotate %8 by %c511_i32 dim 1 : vector<8x512xf32>, i32 -> vector<8x512xf32>
    %c5 = arith.constant 5 : index
    %c0_18 = arith.constant 0 : index
    %c0_19 = arith.constant 0 : index
    %33 = vector.load %arg4[%c5, %c0_18, %c0_19] : memref<9x8x512xf32, #tpu.memory_space<vmem>>, vector<1x8x512xf32>
    %34 = vector.shape_cast %33 : vector<1x8x512xf32> to vector<8x512xf32>
    %35 = arith.mulf %32, %34 : vector<8x512xf32>
    %36 = arith.addf %31, %35 : vector<8x512xf32>
    %c497_i32 = arith.constant 497 : i32
    %37 = tpu.dynamic_rotate %8 by %c497_i32 dim 1 : vector<8x512xf32>, i32 -> vector<8x512xf32>
    %c6 = arith.constant 6 : index
    %c0_20 = arith.constant 0 : index
    %c0_21 = arith.constant 0 : index
    %38 = vector.load %arg4[%c6, %c0_20, %c0_21] : memref<9x8x512xf32, #tpu.memory_space<vmem>>, vector<1x8x512xf32>
    %39 = vector.shape_cast %38 : vector<1x8x512xf32> to vector<8x512xf32>
    %40 = arith.mulf %37, %39 : vector<8x512xf32>
    %41 = arith.addf %36, %40 : vector<8x512xf32>
    %c496_i32 = arith.constant 496 : i32
    %42 = tpu.dynamic_rotate %8 by %c496_i32 dim 1 : vector<8x512xf32>, i32 -> vector<8x512xf32>
    %c7 = arith.constant 7 : index
    %c0_22 = arith.constant 0 : index
    %c0_23 = arith.constant 0 : index
    %43 = vector.load %arg4[%c7, %c0_22, %c0_23] : memref<9x8x512xf32, #tpu.memory_space<vmem>>, vector<1x8x512xf32>
    %44 = vector.shape_cast %43 : vector<1x8x512xf32> to vector<8x512xf32>
    %45 = arith.mulf %42, %44 : vector<8x512xf32>
    %46 = arith.addf %41, %45 : vector<8x512xf32>
    %c495_i32 = arith.constant 495 : i32
    %47 = tpu.dynamic_rotate %8 by %c495_i32 dim 1 : vector<8x512xf32>, i32 -> vector<8x512xf32>
    %c8 = arith.constant 8 : index
    %c0_24 = arith.constant 0 : index
    %c0_25 = arith.constant 0 : index
    %48 = vector.load %arg4[%c8, %c0_24, %c0_25] : memref<9x8x512xf32, #tpu.memory_space<vmem>>, vector<1x8x512xf32>
    %49 = vector.shape_cast %48 : vector<1x8x512xf32> to vector<8x512xf32>
    %50 = arith.mulf %47, %49 : vector<8x512xf32>
    %51 = arith.addf %46, %50 : vector<8x512xf32>
    %c0_26 = arith.constant 0 : index
    %c0_27 = arith.constant 0 : index
    %52 = vector.load %arg5[%c0_26, %c0_27] : memref<8x1xf32, #tpu.memory_space<vmem>>, vector<8x1xf32>
    %53 = vector.broadcast %52 : vector<8x1xf32> to vector<8x512xf32>
    %54 = arith.addf %51, %53 : vector<8x512xf32>
    %cst_28 = arith.constant 0.000000e+00 : f32
    %55 = vector.broadcast %cst_28 : f32 to vector<8x512xf32>
    %56 = arith.maximumf %54, %55 : vector<8x512xf32>
    %c0_29 = arith.constant 0 : index
    %c0_30 = arith.constant 0 : index
    %57 = vector.load %arg6[%c0_29, %c0_30] : memref<8x8xbf16, #tpu.memory_space<vmem>>, vector<8x8xbf16>
    %58 = arith.truncf %56 : vector<8x512xf32> to vector<8x512xbf16>
    %cst_31 = arith.constant dense<0.000000e+00> : vector<8x512xf32>
    %59 = tpu.matmul %57, %58, %cst_31 {dimension_numbers = #tpu.dot_dimension_numbers<[1], [0], [0], [1], [0, 0, 1, 1], [], []>} : vector<8x8xbf16>, vector<8x512xbf16>, vector<8x512xf32> -> vector<8x512xf32>
    %c0_32 = arith.constant 0 : index
    %c0_33 = arith.constant 0 : index
    %60 = vector.load %arg7[%c0_32, %c0_33] : memref<8x1xf32, #tpu.memory_space<vmem>>, vector<8x1xf32>
    %61 = vector.broadcast %60 : vector<8x1xf32> to vector<8x512xf32>
    %62 = arith.addf %59, %61 : vector<8x512xf32>
    %cst_34 = arith.constant 0.000000e+00 : f32
    %63 = vector.broadcast %cst_34 : f32 to vector<8x512xf32>
    %64 = arith.maximumf %62, %63 : vector<8x512xf32>
    %c511_i32_35 = arith.constant 511 : i32
    %65 = tpu.dynamic_rotate %64 by %c511_i32_35 dim 1 : vector<8x512xf32>, i32 -> vector<8x512xf32>
    %66 = arith.maximumf %64, %65 : vector<8x512xf32>
    %c496_i32_36 = arith.constant 496 : i32
    %67 = tpu.dynamic_rotate %66 by %c496_i32_36 dim 1 : vector<8x512xf32>, i32 -> vector<8x512xf32>
    %68 = arith.maximumf %66, %67 : vector<8x512xf32>
    %c0_37 = arith.constant 0 : index
    %c0_38 = arith.constant 0 : index
    %69 = vector.load %arg8[%c0_37, %c0_38] : memref<512x128xf32, #tpu.memory_space<vmem>>, vector<512x128xf32>
    %cst_39 = arith.constant dense<0.000000e+00> : vector<8x128xf32>
    %70 = tpu.matmul %68, %69, %cst_39 {dimension_numbers = #tpu.dot_dimension_numbers<[1], [0], [0], [1], [0, 0, 1, 1], [], []>} : vector<8x512xf32>, vector<512x128xf32>, vector<8x128xf32> -> vector<8x128xf32>
    %c0_40 = arith.constant 0 : index
    %c0_41 = arith.constant 0 : index
    %c0_42 = arith.constant 0 : index
    %71 = vector.load %arg9[%c0_40, %c0_41, %c0_42] : memref<1x8x128xf32, #tpu.memory_space<vmem>>, vector<1x8x128xf32>
    %72 = vector.shape_cast %71 : vector<1x8x128xf32> to vector<8x128xf32>
    %73 = vector.shape_cast %70 : vector<8x128xf32> to vector<1x8x128xf32>
    tpu.vector_store %arg9[%c0_40, %c0_41, %c0_42], %73 {strides = array<i32>} : memref<1x8x128xf32, #tpu.memory_space<vmem>>, vector<1x8x128xf32>,
    return
  }
  func.func @transform_0(%arg0: i32) -> (i32, i32, i32) {
    %c0_i32 = arith.constant 0 : i32
    %c0_i32_0 = arith.constant 0 : i32
    %c0_i32_1 = arith.constant 0 : i32
    return %arg0, %c0_i32, %c0_i32_0 : i32, i32, i32
  }
  func.func @transform_1(%arg0: i32) -> (i32, i32) {
    %c0_i32 = arith.constant 0 : i32
    %c0_i32_0 = arith.constant 0 : i32
    %c0_i32_1 = arith.constant 0 : i32
    return %c0_i32, %c0_i32_0 : i32, i32
  }
  func.func @transform_2(%arg0: i32) -> (i32, i32) {
    %c0_i32 = arith.constant 0 : i32
    %c0_i32_0 = arith.constant 0 : i32
    %c0_i32_1 = arith.constant 0 : i32
    return %c0_i32, %c0_i32_0 : i32, i32
  }
  func.func @transform_3(%arg0: i32) -> (i32, i32, i32) {
    %c0_i32 = arith.constant 0 : i32
    %c0_i32_0 = arith.constant 0 : i32
    %c0_i32_1 = arith.constant 0 : i32
    %c0_i32_2 = arith.constant 0 : i32
    return %c0_i32, %c0_i32_0, %c0_i32_1 : i32, i32, i32
  }
  func.func @transform_4(%arg0: i32) -> (i32, i32) {
    %c0_i32 = arith.constant 0 : i32
    %c0_i32_0 = arith.constant 0 : i32
    %c0_i32_1 = arith.constant 0 : i32
    return %c0_i32, %c0_i32_0 : i32, i32
  }
  func.func @transform_5(%arg0: i32) -> (i32, i32) {
    %c0_i32 = arith.constant 0 : i32
    %c0_i32_0 = arith.constant 0 : i32
    %c0_i32_1 = arith.constant 0 : i32
    return %c0_i32, %c0_i32_0 : i32, i32
  }
  func.func @transform_6(%arg0: i32) -> (i32, i32) {
    %c0_i32 = arith.constant 0 : i32
    %c0_i32_0 = arith.constant 0 : i32
    %c0_i32_1 = arith.constant 0 : i32
    return %c0_i32, %c0_i32_0 : i32, i32
  }
  func.func @transform_7(%arg0: i32) -> (i32, i32) {
    %c0_i32 = arith.constant 0 : i32
    %c0_i32_0 = arith.constant 0 : i32
    %c0_i32_1 = arith.constant 0 : i32
    return %c0_i32, %c0_i32_0 : i32, i32
  }
  func.func @transform_8(%arg0: i32) -> (i32, i32, i32) {
    %c0_i32 = arith.constant 0 : i32
    %c0_i32_0 = arith.constant 0 : i32
    %c0_i32_1 = arith.constant 0 : i32
    return %arg0, %c0_i32, %c0_i32_0 : i32, i32, i32
  }
}

</mosaic_0001>

<llo_original>
// kernel: tpu_custom_call.1
$region0: #{tpu_custom_call.1}
  #allocation0 [shape = 'u32[]', space=smem, size = 0x4, offset = 0x4, fixed_abs, tag = 'smem constant byte address 0x4 - core index']
  #allocation1 [shape = 'u32[144,128]{1,0:T(1,128)}', space=vmem, size = 0x12000, scoped, tag = 'internal scratch']
  %s0 = inlined_call_operand.vmem [shape: bf16[1,4,512], index: 0, kind: input, shape index: {}]
  %s1 = inlined_call_operand.vmem [shape: bf16[8,4], index: 1, kind: input, shape index: {}]
  %s2 = inlined_call_operand.vmem [shape: f32[8,1], index: 2, kind: input, shape index: {}]
  %s3 = inlined_call_operand.hbm [shape: f32[9,8,512], index: 3, kind: input, shape index: {}]
  %s4 = inlined_call_operand.vmem [shape: f32[8,1], index: 4, kind: input, shape index: {}]
  %s5 = inlined_call_operand.vmem [shape: bf16[8,8], index: 5, kind: input, shape index: {}]
  %s6 = inlined_call_operand.vmem [shape: f32[8,1], index: 6, kind: input, shape index: {}]
  %s7 = inlined_call_operand.hbm [shape: f32[512,128], index: 7, kind: input, shape index: {}]
  %s8 = inlined_call_operand.hbm [shape: f32[1,8,128], index: 8, kind: output, shape index: {}]
  %s9 = sld [smem:[#allocation0]]
  $region50: #{tpu_custom_call.1} parent=0
    _
  %s11 = ssub.s32 1, %s9
  %s12 = scalar_select 0, %s11, %s9
  $region1: #{tpu_custom_call.1} parent=0
    #allocation2 [shape = 'u8[147456]{0}', space=vmem, size = 0x24000, scoped, tag = 'input window, operand 3, single buffered']
    #allocation3 [shape = 's32[1]{0}', space=sflag, size = 0x4, scoped, tag = 'scoped memory for tpu_custom_call.1']
    #allocation4 [shape = 's32[1]{0}', space=sflag, size = 0x4, scoped, tag = 'scoped memory for tpu_custom_call.1']
    #allocation5 [shape = 'u8[262144]{0}', space=vmem, size = 0x40000, scoped, tag = 'input window, operand 7, single buffered']
    #allocation6 [shape = 's32[1]{0}', space=sflag, size = 0x4, scoped, tag = 'scoped memory for tpu_custom_call.1']
    #allocation7 [shape = 'u8[4096]{0}', space=vmem, size = 0x1000, scoped, tag = 'output window, operand 0, single buffered']
    %13 = vsyncpa [#allocation3], 0
    %14 = vsyncpa [#allocation6], 0
    %15 = vsyncpa [#allocation4], 0
    // Predicated region
    $region2: #{tpu_custom_call.1} parent=1 // pred_check
      _
    $region3: #{tpu_custom_call.1} parent=1 // pred_check_branch
      %17 = sbr.rel (0) target = $region5
    $region4: #{tpu_custom_call.1} parent=1 // pred_region
      _
    $region5: #{tpu_custom_call.1} parent=1 // pred_fallthru
      _
    // Predicated region
    $region6: #{tpu_custom_call.1} parent=1 // pred_check
      _
    $region7: #{tpu_custom_call.1} parent=1 // pred_check_branch
      %19 = sbr.rel (0) target = $region9
    $region8: #{tpu_custom_call.1} parent=1 // pred_region
      _
    $region9: #{tpu_custom_call.1} parent=1 // pred_fallthru
      _
    // Predicated region
    $region10: #{tpu_custom_call.1} parent=1 // pred_check
      _
    $region11: #{tpu_custom_call.1} parent=1 // pred_check_branch
      %21 = sbr.rel (0) target = $region13
    $region12: #{tpu_custom_call.1} parent=1 // pred_region
      _
    $region13: #{tpu_custom_call.1} parent=1 // pred_fallthru
      _
    // Predicated region
    $region14: #{tpu_custom_call.1} parent=1 // pred_check
      _
    $region15: #{tpu_custom_call.1} parent=1 // pred_check_branch
      %23 = sbr.rel (0) target = $region17
    $region16: #{tpu_custom_call.1} parent=1 // pred_region
      %s25 = ssub.s32 4608, 4608
      %26 = vsyncadd [#allocation3], %s25
      %s27 = sshll.u32 [#allocation2], 4
      %s28 = int_to_ptr.vmem [resolvable:$true] %s27
      %33 = dma.hbm_to_vmem [thread:$0]  %s3, 4608, %s28, [#allocation3], 512, 512, 32
    $region17: #{tpu_custom_call.1} parent=1 // pred_fallthru
      _
    // Predicated region
    $region18: #{tpu_custom_call.1} parent=1 // pred_check
      _
    $region19: #{tpu_custom_call.1} parent=1 // pred_check_branch
      %35 = sbr.rel (0) target = $region21
    $region20: #{tpu_custom_call.1} parent=1 // pred_region
      _
    $region21: #{tpu_custom_call.1} parent=1 // pred_fallthru
      _
    // Predicated region
    $region22: #{tpu_custom_call.1} parent=1 // pred_check
      _
    $region23: #{tpu_custom_call.1} parent=1 // pred_check_branch
      %37 = sbr.rel (0) target = $region25
    $region24: #{tpu_custom_call.1} parent=1 // pred_region
      _
    $region25: #{tpu_custom_call.1} parent=1 // pred_fallthru
      _
    // Predicated region
    $region26: #{tpu_custom_call.1} parent=1 // pred_check
      _
    $region27: #{tpu_custom_call.1} parent=1 // pred_check_branch
      %39 = sbr.rel (0) target = $region29
    $region28: #{tpu_custom_call.1} parent=1 // pred_region
      _
    $region29: #{tpu_custom_call.1} parent=1 // pred_fallthru
      _
    // Predicated region
    $region30: #{tpu_custom_call.1} parent=1 // pred_check
      _
    $region31: #{tpu_custom_call.1} parent=1 // pred_check_branch
      %41 = sbr.rel (0) target = $region33
    $region32: #{tpu_custom_call.1} parent=1 // pred_region
      %s43 = ssub.s32 8192, 8192
      %44 = vsyncadd [#allocation6], %s43
      %s45 = sshll.u32 [#allocation5], 4
      %s46 = int_to_ptr.vmem [resolvable:$true] %s45
      %51 = dma.hbm_to_vmem [thread:$0]  %s7, 8192, %s46, [#allocation6], 128, 128, 8
    $region33: #{tpu_custom_call.1} parent=1 // pred_fallthru
      _
    // Predicated region
    $region34: #{tpu_custom_call.1} parent=1 // pred_check
      _
    $region35: #{tpu_custom_call.1} parent=1 // pred_check_branch
      %53 = sbr.rel (0) target = $region37
    $region36: #{tpu_custom_call.1} parent=1 // pred_region
      %54 = dma.done [#allocation3], 4608
    $region37: #{tpu_custom_call.1} parent=1 // pred_fallthru
      _
    // Predicated region
    $region38: #{tpu_custom_call.1} parent=1 // pred_check
      _
    $region39: #{tpu_custom_call.1} parent=1 // pred_check_branch
      %56 = sbr.rel (0) target = $region41
    $region40: #{tpu_custom_call.1} parent=1 // pred_region
      %57 = dma.done [#allocation6], 8192
    $region41: #{tpu_custom_call.1} parent=1 // pred_fallthru
      _
    %v59 = vld [vmem:[%s0] sm:$0xff]
    %v60 = vld [vmem:[%s1] sm:$0xf]
    %v61 = vld [vmem:[%s2] sm:$0xff]
    %63 = vset.pattern.permute.xlu0 0
    %64 = vperm.xlu0 %63, %v61
    %v65 = vpop.permute.xlu0 %64
    %v68 = vcombine.high %v59, %v59
    %v70 = vunpack.c.l.s4 1983009808
    %v71 = vunpack.c.0.s8 %v70
    %v72 = vlaneseq
    %v73 = vshrl.u32 %v72, 7
    %v74 = vsub.s32 %v71, %v73
    %v75 = vrot.slane %v59, %v74
    %v77 = vunpack.c.l.s4 1983009808
    %v78 = vunpack.c.0.s8 %v77
    %v79 = vlaneseq
    %v80 = vshrl.u32 %v79, 7
    %v81 = vsub.s32 %v78, %v80
    %v82 = vrot.slane %v68, %v81
    %v83 = vcombine.high %v75, %v75
    %v84 = vcombine.high %v82, %v82
    %vm85 = vcmask 31744
    %v87 = vsel %vm85, %v60, 0
    %vm89 = vcmask 1041408
    %v91 = vsel %vm89, %v75, 0
    %v94 = vsel %vm89, %v83, 0
    %v97 = vsel %vm89, %v82, 0
    %v100 = vsel %vm89, %v84, 0
    %102 = vmatprep.subr.bf16.mxu0 %v94
    %103 = vmatpush1.bf16.msra.mxu0 %v91
    %104 = vmatprep.subr.bf16.mxu0 0
    %105 = vmatpush1.bf16.msra.mxu0 0
    %106 = vmatprep.subr.bf16.mxu0 0
    %107 = vmatpush1.bf16.msra.mxu0 0
    %108 = vmatprep.subr.bf16.mxu0 0
    %109 = vmatpush1.bf16.msra.mxu0 0
    %110 = vmatprep.subr.bf16.mxu0 0
    %111 = vmatpush1.bf16.msra.mxu0 0
    %112 = vmatprep.subr.bf16.mxu0 0
    %113 = vmatpush1.bf16.msra.mxu0 0
    %114 = vmatprep.subr.bf16.mxu0 0
    %115 = vmatpush1.bf16.msra.mxu0 0
    %116 = vmatprep.subr.bf16.mxu0 0
    %117 = vmatpush1.bf16.msra.mxu0 0
    %118 = vmatprep.subr.bf16.mxu0 0
    %119 = vmatpush1.bf16.msra.mxu0 0
    %120 = vmatprep.subr.bf16.mxu0 0
    %121 = vmatpush1.bf16.msra.mxu0 0
    %122 = vmatprep.subr.bf16.mxu0 0
    %123 = vmatpush1.bf16.msra.mxu0 0
    %124 = vmatprep.subr.bf16.mxu0 0
    %125 = vmatpush1.bf16.msra.mxu0 0
    %126 = vmatprep.subr.bf16.mxu0 0
    %127 = vmatpush1.bf16.msra.mxu0 0
    %128 = vmatprep.subr.bf16.mxu0 0
    %129 = vmatpush1.bf16.msra.mxu0 0
    %130 = vmatprep.subr.bf16.mxu0 0
    %131 = vmatpush1.bf16.msra.mxu0 0
    %132 = vmatprep.subr.bf16.mxu0 0
    %133 = vmatpush1.bf16.msra.mxu0 0
    %134 = vmatprep.mubr.bf16.mxu0 0
    %135 = vmatmul.mubr.bf16.gmra.mrb[0].mxu0 %v87
    %v136 = vpop.f32.mrb[0].mxu0
    %v137 = vadd.f32 %v65, %v136
    %v138 = vpop.f32.mrb[0].mxu0
    %v139 = vadd.f32 %v65, %v138
    %v140 = vpop.f32.mrb[0].mxu0
    %v141 = vpop.f32.mrb[0].mxu0
    %142 = vdwg.mxu0
    %143 = vmatprep.subr.bf16.mxu0 %v100
    %144 = vmatpush1.bf16.msra.mxu0 %v97
    %145 = vmatprep.subr.bf16.mxu0 0
    %146 = vmatpush1.bf16.msra.mxu0 0
    %147 = vmatprep.subr.bf16.mxu0 0
    %148 = vmatpush1.bf16.msra.mxu0 0
    %149 = vmatprep.subr.bf16.mxu0 0
    %150 = vmatpush1.bf16.msra.mxu0 0
    %151 = vmatprep.subr.bf16.mxu0 0
    %152 = vmatpush1.bf16.msra.mxu0 0
    %153 = vmatprep.subr.bf16.mxu0 0
    %154 = vmatpush1.bf16.msra.mxu0 0
    %155 = vmatprep.subr.bf16.mxu0 0
    %156 = vmatpush1.bf16.msra.mxu0 0
    %157 = vmatprep.subr.bf16.mxu0 0
    %158 = vmatpush1.bf16.msra.mxu0 0
    %159 = vmatprep.subr.bf16.mxu0 0
    %160 = vmatpush1.bf16.msra.mxu0 0
    %161 = vmatprep.subr.bf16.mxu0 0
    %162 = vmatpush1.bf16.msra.mxu0 0
    %163 = vmatprep.subr.bf16.mxu0 0
    %164 = vmatpush1.bf16.msra.mxu0 0
    %165 = vmatprep.subr.bf16.mxu0 0
    %166 = vmatpush1.bf16.msra.mxu0 0
    %167 = vmatprep.subr.bf16.mxu0 0
    %168 = vmatpush1.bf16.msra.mxu0 0
    %169 = vmatprep.subr.bf16.mxu0 0
    %170 = vmatpush1.bf16.msra.mxu0 0
    %171 = vmatprep.subr.bf16.mxu0 0
    %172 = vmatpush1.bf16.msra.mxu0 0
    %173 = vmatprep.subr.bf16.mxu0 0
    %174 = vmatpush1.bf16.msra.mxu0 0
    %175 = vmatprep.mubr.bf16.mxu0 0
    %176 = vmatmul.mubr.bf16.gmra.mrb[0].mxu0 %v87
    %v177 = vpop.f32.mrb[0].mxu0
    %v178 = vadd.f32 %v65, %v177
    %v179 = vpop.f32.mrb[0].mxu0
    %v180 = vadd.f32 %v65, %v179
    %v181 = vpop.f32.mrb[0].mxu0
    %v182 = vpop.f32.mrb[0].mxu0
    %183 = vdwg.mxu0
    %v184 = vmax.f32 %v137, 0.0
    %v185 = vmax.f32 %v139, 0.0
    %v186 = vmax.f32 %v178, 0.0
    %v187 = vmax.f32 %v180, 0.0
    %s188 = scalar_lea.vmem [#allocation2], 128
    %v189 = vld [vmem:[%s188] sm:$0xff]
    %v190 = vld [vmem:[%s188 + $0x8] sm:$0xff]
    %v191 = vld [vmem:[%s188 + $0x10] sm:$0xff]
    %v192 = vld [vmem:[%s188 + $0x18] sm:$0xff]
    %v193 = vmul.f32 %v184, %v189
    %v194 = vmul.f32 %v185, %v190
    %v195 = vmul.f32 %v186, %v191
    %v196 = vmul.f32 %v187, %v192
    %197 = vrot.lane.b32.xlu0 %v184, 17
    %v198 = vpop.permute.xlu0 %197
    %199 = vrot.lane.b32.xlu0 %v185, 17
    %v200 = vpop.permute.xlu0 %199
    %201 = vrot.lane.b32.xlu0 %v186, 17
    %v202 = vpop.permute.xlu0 %201
    %203 = vrot.lane.b32.xlu0 %v187, 17
    %v204 = vpop.permute.xlu0 %203
    %v205 = vlaneseq
    %v206 = vand.u32 %v205, 127
    %vm207 = vcmp.lt.s32.totalorder %v206, 17
    %v208 = vsel %vm207, %v202, %v204
    %v209 = vsel %vm207, %v200, %v202
    %v210 = vsel %vm207, %v198, %v200
    %v211 = vsel %vm207, %v204, %v198
    %v212 = vld [vmem:[#allocation2] sm:$0xff]
    %v213 = vld [vmem:[#allocation2 + $0x8] sm:$0xff]
    %v214 = vld [vmem:[#allocation2 + $0x10] sm:$0xff]
    %v215 = vld [vmem:[#allocation2 + $0x18] sm:$0xff]
    %v216 = vmul.f32 %v211, %v212
    %v217 = vmul.f32 %v210, %v213
    %v218 = vmul.f32 %v209, %v214
    %v219 = vmul.f32 %v208, %v215
    %v220 = vadd.f32 %v193, %v216
    %v221 = vadd.f32 %v194, %v217
    %v222 = vadd.f32 %v195, %v218
    %v223 = vadd.f32 %v196, %v219
    %224 = vrot.lane.b32.xlu0 %v184, 16
    %v225 = vpop.permute.xlu0 %224
    %226 = vrot.lane.b32.xlu0 %v185, 16
    %v227 = vpop.permute.xlu0 %226
    %228 = vrot.lane.b32.xlu0 %v186, 16
    %v229 = vpop.permute.xlu0 %228
    %230 = vrot.lane.b32.xlu0 %v187, 16
    %v231 = vpop.permute.xlu0 %230
    %vm232 = vcmp.lt.s32.totalorder %v206, 16
    %v233 = vsel %vm232, %v229, %v231
    %v234 = vsel %vm232, %v227, %v229
    %v235 = vsel %vm232, %v225, %v227
    %v236 = vsel %vm232, %v231, %v225
    %s237 = scalar_lea.vmem [#allocation2], 32
    %v238 = vld [vmem:[%s237] sm:$0xff]
    %v239 = vld [vmem:[%s237 + $0x8] sm:$0xff]
    %v240 = vld [vmem:[%s237 + $0x10] sm:$0xff]
    %v241 = vld [vmem:[%s237 + $0x18] sm:$0xff]
    %v242 = vmul.f32 %v236, %v238
    %v243 = vmul.f32 %v235, %v239
    %v244 = vmul.f32 %v234, %v240
    %v245 = vmul.f32 %v233, %v241
    %v246 = vadd.f32 %v220, %v242
    %v247 = vadd.f32 %v221, %v243
    %v248 = vadd.f32 %v222, %v244
    %v249 = vadd.f32 %v223, %v245
    %250 = vrot.lane.b32.xlu0 %v184, 15
    %v251 = vpop.permute.xlu0 %250
    %252 = vrot.lane.b32.xlu0 %v185, 15
    %v253 = vpop.permute.xlu0 %252
    %254 = vrot.lane.b32.xlu0 %v186, 15
    %v255 = vpop.permute.xlu0 %254
    %256 = vrot.lane.b32.xlu0 %v187, 15
    %v257 = vpop.permute.xlu0 %256
    %vm258 = vcmp.lt.s32.totalorder %v206, 15
    %v259 = vsel %vm258, %v255, %v257
    %v260 = vsel %vm258, %v253, %v255
    %v261 = vsel %vm258, %v251, %v253
    %v262 = vsel %vm258, %v257, %v251
    %s263 = scalar_lea.vmem [#allocation2], 64
    %v264 = vld [vmem:[%s263] sm:$0xff]
    %v265 = vld [vmem:[%s263 + $0x8] sm:$0xff]
    %v266 = vld [vmem:[%s263 + $0x10] sm:$0xff]
    %v267 = vld [vmem:[%s263 + $0x18] sm:$0xff]
    %v268 = vmul.f32 %v262, %v264
    %v269 = vmul.f32 %v261, %v265
    %v270 = vmul.f32 %v260, %v266
    %v271 = vmul.f32 %v259, %v267
    %v272 = vadd.f32 %v246, %v268
    %v273 = vadd.f32 %v247, %v269
    %v274 = vadd.f32 %v248, %v270
    %v275 = vadd.f32 %v249, %v271
    %276 = vrot.lane.b32.xlu0 %v184, 1
    %v277 = vpop.permute.xlu0 %276
    %278 = vrot.lane.b32.xlu0 %v185, 1
    %v279 = vpop.permute.xlu0 %278
    %280 = vrot.lane.b32.xlu0 %v186, 1
    %v281 = vpop.permute.xlu0 %280
    %282 = vrot.lane.b32.xlu0 %v187, 1
    %v283 = vpop.permute.xlu0 %282
    %vm284 = vcmp.lt.s32.totalorder %v206, 1
    %v285 = vsel %vm284, %v281, %v283
    %v286 = vsel %vm284, %v279, %v281
    %v287 = vsel %vm284, %v277, %v279
    %v288 = vsel %vm284, %v283, %v277
    %s289 = scalar_lea.vmem [#allocation2], 96
    %v290 = vld [vmem:[%s289] sm:$0xff]
    %v291 = vld [vmem:[%s289 + $0x8] sm:$0xff]
    %v292 = vld [vmem:[%s289 + $0x10] sm:$0xff]
    %v293 = vld [vmem:[%s289 + $0x18] sm:$0xff]
    %v294 = vmul.f32 %v288, %v290
    %v295 = vmul.f32 %v287, %v291
    %v296 = vmul.f32 %v286, %v292
    %v297 = vmul.f32 %v285, %v293
    %v298 = vadd.f32 %v272, %v294
    %v299 = vadd.f32 %v273, %v295
    %v300 = vadd.f32 %v274, %v296
    %v301 = vadd.f32 %v275, %v297
    %302 = vrot.lane.b32.xlu0 %v184, 127
    %v303 = vpop.permute.xlu0 %302
    %304 = vrot.lane.b32.xlu0 %v185, 127
    %v305 = vpop.permute.xlu0 %304
    %306 = vrot.lane.b32.xlu0 %v186, 127
    %v307 = vpop.permute.xlu0 %306
    %308 = vrot.lane.b32.xlu0 %v187, 127
    %v309 = vpop.permute.xlu0 %308
    %vm310 = vcmp.lt.s32.totalorder %v206, 127
    %v311 = vsel %vm310, %v307, %v309
    %v312 = vsel %vm310, %v305, %v307
    %v313 = vsel %vm310, %v303, %v305
    %v314 = vsel %vm310, %v309, %v303
    %s315 = scalar_lea.vmem [#allocation2], 160
    %v316 = vld [vmem:[%s315] sm:$0xff]
    %v317 = vld [vmem:[%s315 + $0x8] sm:$0xff]
    %v318 = vld [vmem:[%s315 + $0x10] sm:$0xff]
    %v319 = vld [vmem:[%s315 + $0x18] sm:$0xff]
    %v320 = vmul.f32 %v313, %v316
    %v321 = vmul.f32 %v312, %v317
    %v322 = vmul.f32 %v311, %v318
    %v323 = vmul.f32 %v314, %v319
    %v324 = vadd.f32 %v298, %v320
    %v325 = vadd.f32 %v299, %v321
    %v326 = vadd.f32 %v300, %v322
    %v327 = vadd.f32 %v301, %v323
    %328 = vrot.lane.b32.xlu0 %v184, 113
    %v329 = vpop.permute.xlu0 %328
    %330 = vrot.lane.b32.xlu0 %v185, 113
    %v331 = vpop.permute.xlu0 %330
    %332 = vrot.lane.b32.xlu0 %v186, 113
    %v333 = vpop.permute.xlu0 %332
    %334 = vrot.lane.b32.xlu0 %v187, 113
    %v335 = vpop.permute.xlu0 %334
    %vm336 = vcmp.lt.s32.totalorder %v206, 113
    %v337 = vsel %vm336, %v333, %v335
    %v338 = vsel %vm336, %v331, %v333
    %v339 = vsel %vm336, %v329, %v331
    %v340 = vsel %vm336, %v335, %v329
    %s341 = scalar_lea.vmem [#allocation2], 192
    %v342 = vld [vmem:[%s341] sm:$0xff]
    %v343 = vld [vmem:[%s341 + $0x8] sm:$0xff]
    %v344 = vld [vmem:[%s341 + $0x10] sm:$0xff]
    %v345 = vld [vmem:[%s341 + $0x18] sm:$0xff]
    %v346 = vmul.f32 %v339, %v342
    %v347 = vmul.f32 %v338, %v343
    %v348 = vmul.f32 %v337, %v344
    %v349 = vmul.f32 %v340, %v345
    %v350 = vadd.f32 %v324, %v346
    %v351 = vadd.f32 %v325, %v347
    %v352 = vadd.f32 %v326, %v348
    %v353 = vadd.f32 %v327, %v349
    %354 = vrot.lane.b32.xlu0 %v184, 112
    %v355 = vpop.permute.xlu0 %354
    %356 = vrot.lane.b32.xlu0 %v185, 112
    %v357 = vpop.permute.xlu0 %356
    %358 = vrot.lane.b32.xlu0 %v186, 112
    %v359 = vpop.permute.xlu0 %358
    %360 = vrot.lane.b32.xlu0 %v187, 112
    %v361 = vpop.permute.xlu0 %360
    %vm362 = vcmp.lt.s32.totalorder %v206, 112
    %v363 = vsel %vm362, %v359, %v361
    %v364 = vsel %vm362, %v357, %v359
    %v365 = vsel %vm362, %v355, %v357
    %v366 = vsel %vm362, %v361, %v355
    %s367 = scalar_lea.vmem [#allocation2], 224
    %v368 = vld [vmem:[%s367] sm:$0xff]
    %v369 = vld [vmem:[%s367 + $0x8] sm:$0xff]
    %v370 = vld [vmem:[%s367 + $0x10] sm:$0xff]
    %v371 = vld [vmem:[%s367 + $0x18] sm:$0xff]
    %v372 = vmul.f32 %v365, %v368
    %v373 = vmul.f32 %v364, %v369
    %v374 = vmul.f32 %v363, %v370
    %v375 = vmul.f32 %v366, %v371
    %v376 = vadd.f32 %v350, %v372
    %v377 = vadd.f32 %v351, %v373
    %v378 = vadd.f32 %v352, %v374
    %v379 = vadd.f32 %v353, %v375
    %380 = vrot.lane.b32.xlu0 %v184, 111
    %v381 = vpop.permute.xlu0 %380
    %382 = vrot.lane.b32.xlu0 %v185, 111
    %v383 = vpop.permute.xlu0 %382
    %384 = vrot.lane.b32.xlu0 %v186, 111
    %v385 = vpop.permute.xlu0 %384
    %386 = vrot.lane.b32.xlu0 %v187, 111
    %v387 = vpop.permute.xlu0 %386
    %vm388 = vcmp.lt.s32.totalorder %v206, 111
    %v389 = vsel %vm388, %v385, %v387
    %v390 = vsel %vm388, %v383, %v385
    %v391 = vsel %vm388, %v381, %v383
    %v392 = vsel %vm388, %v387, %v381
    %s393 = scalar_lea.vmem [#allocation2], 256
    %v394 = vld [vmem:[%s393] sm:$0xff]
    %v395 = vld [vmem:[%s393 + $0x8] sm:$0xff]
    %v396 = vld [vmem:[%s393 + $0x10] sm:$0xff]
    %v397 = vld [vmem:[%s393 + $0x18] sm:$0xff]
    %v398 = vmul.f32 %v391, %v394
    %v399 = vmul.f32 %v390, %v395
    %v400 = vmul.f32 %v389, %v396
    %v401 = vmul.f32 %v392, %v397
    %v402 = vadd.f32 %v376, %v398
    %v403 = vadd.f32 %v377, %v399
    %v404 = vadd.f32 %v378, %v400
    %v405 = vadd.f32 %v379, %v401
    %v406 = vld [vmem:[%s4] sm:$0xff]
    %408 = vset.pattern.permute.xlu0 0
    %409 = vperm.xlu0 %408, %v406
    %v410 = vpop.permute.xlu0 %409
    %v412 = vadd.f32 %v402, %v410
    %v413 = vadd.f32 %v403, %v410
    %v414 = vadd.f32 %v404, %v410
    %v415 = vadd.f32 %v405, %v410
    %v416 = vmax.f32 %v412, 0.0
    %v417 = vmax.f32 %v413, 0.0
    %v418 = vmax.f32 %v414, 0.0
    %v419 = vmax.f32 %v415, 0.0
    %v420 = vld [vmem:[%s5] sm:$0xf]
    %v421 = vpack.c.bf16 %v416, %v416
    %v422 = vpack.c.bf16 %v417, %v417
    %v423 = vpack.c.bf16 %v418, %v418
    %v424 = vpack.c.bf16 %v419, %v419
    %v425 = vld [vmem:[%s6] sm:$0xff]
    %427 = vset.pattern.permute.xlu0 0
    %428 = vperm.xlu0 %427, %v425
    %v429 = vpop.permute.xlu0 %428
    %vm431 = vcmask 64512
    %v433 = vsel %vm431, %v420, 0
    %vm435 = vcmask 1043456
    %v437 = vsel %vm435, %v421, 0
    %v440 = vsel %vm435, %v422, 0
    %v443 = vsel %vm435, %v423, 0
    %v446 = vsel %vm435, %v424, 0
    %448 = vmatprep.subr.bf16.mxu0 %v440
    %449 = vmatpush1.bf16.msra.mxu0 %v437
    %450 = vmatprep.subr.bf16.mxu0 0
    %451 = vmatpush1.bf16.msra.mxu0 0
    %452 = vmatprep.subr.bf16.mxu0 0
    %453 = vmatpush1.bf16.msra.mxu0 0
    %454 = vmatprep.subr.bf16.mxu0 0
    %455 = vmatpush1.bf16.msra.mxu0 0
    %456 = vmatprep.subr.bf16.mxu0 0
    %457 = vmatpush1.bf16.msra.mxu0 0
    %458 = vmatprep.subr.bf16.mxu0 0
    %459 = vmatpush1.bf16.msra.mxu0 0
    %460 = vmatprep.subr.bf16.mxu0 0
    %461 = vmatpush1.bf16.msra.mxu0 0
    %462 = vmatprep.subr.bf16.mxu0 0
    %463 = vmatpush1.bf16.msra.mxu0 0
    %464 = vmatprep.subr.bf16.mxu0 0
    %465 = vmatpush1.bf16.msra.mxu0 0
    %466 = vmatprep.subr.bf16.mxu0 0
    %467 = vmatpush1.bf16.msra.mxu0 0
    %468 = vmatprep.subr.bf16.mxu0 0
    %469 = vmatpush1.bf16.msra.mxu0 0
    %470 = vmatprep.subr.bf16.mxu0 0
    %471 = vmatpush1.bf16.msra.mxu0 0
    %472 = vmatprep.subr.bf16.mxu0 0
    %473 = vmatpush1.bf16.msra.mxu0 0
    %474 = vmatprep.subr.bf16.mxu0 0
    %475 = vmatpush1.bf16.msra.mxu0 0
    %476 = vmatprep.subr.bf16.mxu0 0
    %477 = vmatpush1.bf16.msra.mxu0 0
    %478 = vmatprep.subr.bf16.mxu0 0
    %479 = vmatpush1.bf16.msra.mxu0 0
    %480 = vmatprep.mubr.bf16.mxu0 0
    %481 = vmatmul.mubr.bf16.gmra.mrb[0].mxu0 %v433
    %v482 = vpop.f32.mrb[0].mxu0
    %v483 = vadd.f32 %v429, %v482
    %v484 = vpop.f32.mrb[0].mxu0
    %v485 = vadd.f32 %v429, %v484
    %v486 = vpop.f32.mrb[0].mxu0
    %v487 = vpop.f32.mrb[0].mxu0
    %488 = vdwg.mxu0
    %489 = vmatprep.subr.bf16.mxu0 %v446
    %490 = vmatpush1.bf16.msra.mxu0 %v443
    %491 = vmatprep.subr.bf16.mxu0 0
    %492 = vmatpush1.bf16.msra.mxu0 0
    %493 = vmatprep.subr.bf16.mxu0 0
    %494 = vmatpush1.bf16.msra.mxu0 0
    %495 = vmatprep.subr.bf16.mxu0 0
    %496 = vmatpush1.bf16.msra.mxu0 0
    %497 = vmatprep.subr.bf16.mxu0 0
    %498 = vmatpush1.bf16.msra.mxu0 0
    %499 = vmatprep.subr.bf16.mxu0 0
    %500 = vmatpush1.bf16.msra.mxu0 0
    %501 = vmatprep.subr.bf16.mxu0 0
    %502 = vmatpush1.bf16.msra.mxu0 0
    %503 = vmatprep.subr.bf16.mxu0 0
    %504 = vmatpush1.bf16.msra.mxu0 0
    %505 = vmatprep.subr.bf16.mxu0 0
    %506 = vmatpush1.bf16.msra.mxu0 0
    %507 = vmatprep.subr.bf16.mxu0 0
    %508 = vmatpush1.bf16.msra.mxu0 0
    %509 = vmatprep.subr.bf16.mxu0 0
    %510 = vmatpush1.bf16.msra.mxu0 0
    %511 = vmatprep.subr.bf16.mxu0 0
    %512 = vmatpush1.bf16.msra.mxu0 0
    %513 = vmatprep.subr.bf16.mxu0 0
    %514 = vmatpush1.bf16.msra.mxu0 0
    %515 = vmatprep.subr.bf16.mxu0 0
    %516 = vmatpush1.bf16.msra.mxu0 0
    %517 = vmatprep.subr.bf16.mxu0 0
    %518 = vmatpush1.bf16.msra.mxu0 0
    %519 = vmatprep.subr.bf16.mxu0 0
    %520 = vmatpush1.bf16.msra.mxu0 0
    %521 = vmatprep.mubr.bf16.mxu0 0
    %522 = vmatmul.mubr.bf16.gmra.mrb[0].mxu0 %v433
    %v523 = vpop.f32.mrb[0].mxu0
    %v524 = vadd.f32 %v429, %v523
    %v525 = vpop.f32.mrb[0].mxu0
    %v526 = vadd.f32 %v429, %v525
    %v527 = vpop.f32.mrb[0].mxu0
    %v528 = vpop.f32.mrb[0].mxu0
    %529 = vdwg.mxu0
    %v530 = vmax.f32 %v483, 0.0
    %v531 = vmax.f32 %v485, 0.0
    %v532 = vmax.f32 %v524, 0.0
    %v533 = vmax.f32 %v526, 0.0
    %534 = vrot.lane.b32.xlu0 %v530, 127
    %v535 = vpop.permute.xlu0 %534
    %536 = vrot.lane.b32.xlu0 %v531, 127
    %v537 = vpop.permute.xlu0 %536
    %538 = vrot.lane.b32.xlu0 %v532, 127
    %v539 = vpop.permute.xlu0 %538
    %540 = vrot.lane.b32.xlu0 %v533, 127
    %v541 = vpop.permute.xlu0 %540
    %v542 = vsel %vm310, %v539, %v541
    %v543 = vsel %vm310, %v537, %v539
    %v544 = vsel %vm310, %v535, %v537
    %v545 = vsel %vm310, %v541, %v535
    %v546 = vmax.f32 %v530, %v544
    %v547 = vmax.f32 %v531, %v543
    %v548 = vmax.f32 %v532, %v542
    %v549 = vmax.f32 %v533, %v545
    %550 = vrot.lane.b32.xlu0 %v546, 112
    %v551 = vpop.permute.xlu0 %550
    %552 = vrot.lane.b32.xlu0 %v547, 112
    %v553 = vpop.permute.xlu0 %552
    %554 = vrot.lane.b32.xlu0 %v548, 112
    %v555 = vpop.permute.xlu0 %554
    %556 = vrot.lane.b32.xlu0 %v549, 112
    %v557 = vpop.permute.xlu0 %556
    %v558 = vsel %vm362, %v555, %v557
    %v559 = vsel %vm362, %v553, %v555
    %v560 = vsel %vm362, %v551, %v553
    %v561 = vsel %vm362, %v557, %v551
    %v562 = vmax.f32 %v546, %v560
    %v563 = vmax.f32 %v547, %v559
    %v564 = vmax.f32 %v548, %v558
    %v565 = vmax.f32 %v549, %v561
    %v566 = vld [vmem:[#allocation5] sm:$0xff]
    %v567 = vld [vmem:[#allocation5 + $0x8] sm:$0xff]
    %v568 = vld [vmem:[#allocation5 + $0x10] sm:$0xff]
    %v569 = vld [vmem:[#allocation5 + $0x18] sm:$0xff]
    %v570 = vld [vmem:[#allocation5 + $0x20] sm:$0xff]
    %v571 = vld [vmem:[#allocation5 + $0x28] sm:$0xff]
    %v572 = vld [vmem:[#allocation5 + $0x30] sm:$0xff]
    %v573 = vld [vmem:[#allocation5 + $0x38] sm:$0xff]
    %v574 = vld [vmem:[#allocation5 + $0x40] sm:$0xff]
    %v575 = vld [vmem:[#allocation5 + $0x48] sm:$0xff]
    %v576 = vld [vmem:[#allocation5 + $0x50] sm:$0xff]
    %v577 = vld [vmem:[#allocation5 + $0x58] sm:$0xff]
    %v578 = vld [vmem:[#allocation5 + $0x60] sm:$0xff]
    %v579 = vld [vmem:[#allocation5 + $0x68] sm:$0xff]
    %v580 = vld [vmem:[#allocation5 + $0x70] sm:$0xff]
    %v581 = vld [vmem:[#allocation5 + $0x78] sm:$0xff]
    %v582 = vld [vmem:[#allocation5 + $0x80] sm:$0xff]
    %v583 = vld [vmem:[#allocation5 + $0x88] sm:$0xff]
    %v584 = vld [vmem:[#allocation5 + $0x90] sm:$0xff]
    %v585 = vld [vmem:[#allocation5 + $0x98] sm:$0xff]
    %v586 = vld [vmem:[#allocation5 + $0xa0] sm:$0xff]
    %v587 = vld [vmem:[#allocation5 + $0xa8] sm:$0xff]
    %v588 = vld [vmem:[#allocation5 + $0xb0] sm:$0xff]
    %v589 = vld [vmem:[#allocation5 + $0xb8] sm:$0xff]
    %v590 = vld [vmem:[#allocation5 + $0xc0] sm:$0xff]
    %v591 = vld [vmem:[#allocation5 + $0xc8] sm:$0xff]
    %v592 = vld [vmem:[#allocation5 + $0xd0] sm:$0xff]
    %v593 = vld [vmem:[#allocation5 + $0xd8] sm:$0xff]
    %v594 = vld [vmem:[#allocation5 + $0xe0] sm:$0xff]
    %v595 = vld [vmem:[#allocation5 + $0xe8] sm:$0xff]
    %v596 = vld [vmem:[#allocation5 + $0xf0] sm:$0xff]
    %v597 = vld [vmem:[#allocation5 + $0xf8] sm:$0xff]
    %v598 = vld [vmem:[#allocation5 + $0x100] sm:$0xff]
    %v599 = vld [vmem:[#allocation5 + $0x108] sm:$0xff]
    %v600 = vld [vmem:[#allocation5 + $0x110] sm:$0xff]
    %v601 = vld [vmem:[#allocation5 + $0x118] sm:$0xff]
    %v602 = vld [vmem:[#allocation5 + $0x120] sm:$0xff]
    %v603 = vld [vmem:[#allocation5 + $0x128] sm:$0xff]
    %v604 = vld [vmem:[#allocation5 + $0x130] sm:$0xff]
    %v605 = vld [vmem:[#allocation5 + $0x138] sm:$0xff]
    %v606 = vld [vmem:[#allocation5 + $0x140] sm:$0xff]
    %v607 = vld [vmem:[#allocation5 + $0x148] sm:$0xff]
    %v608 = vld [vmem:[#allocation5 + $0x150] sm:$0xff]
    %v609 = vld [vmem:[#allocation5 + $0x158] sm:$0xff]
    %v610 = vld [vmem:[#allocation5 + $0x160] sm:$0xff]
    %v611 = vld [vmem:[#allocation5 + $0x168] sm:$0xff]
    %v612 = vld [vmem:[#allocation5 + $0x170] sm:$0xff]
    %v613 = vld [vmem:[#allocation5 + $0x178] sm:$0xff]
    %v614 = vld [vmem:[#allocation5 + $0x180] sm:$0xff]
    %v615 = vld [vmem:[#allocation5 + $0x188] sm:$0xff]
    %v616 = vld [vmem:[#allocation5 + $0x190] sm:$0xff]
    %v617 = vld [vmem:[#allocation5 + $0x198] sm:$0xff]
    %v618 = vld [vmem:[#allocation5 + $0x1a0] sm:$0xff]
    %v619 = vld [vmem:[#allocation5 + $0x1a8] sm:$0xff]
    %v620 = vld [vmem:[#allocation5 + $0x1b0] sm:$0xff]
    %v621 = vld [vmem:[#allocation5 + $0x1b8] sm:$0xff]
    %v622 = vld [vmem:[#allocation5 + $0x1c0] sm:$0xff]
    %v623 = vld [vmem:[#allocation5 + $0x1c8] sm:$0xff]
    %v624 = vld [vmem:[#allocation5 + $0x1d0] sm:$0xff]
    %v625 = vld [vmem:[#allocation5 + $0x1d8] sm:$0xff]
    %v626 = vld [vmem:[#allocation5 + $0x1e0] sm:$0xff]
    %v627 = vld [vmem:[#allocation5 + $0x1e8] sm:$0xff]
    %v628 = vld [vmem:[#allocation5 + $0x1f0] sm:$0xff]
    %v629 = vld [vmem:[#allocation5 + $0x1f8] sm:$0xff]
    %630 = vmatprep.subr.mxu0 0.0
    %631 = vmatpush1.msra.mxu0 %v566
    %632 = vmatprep.subr.mxu0 0.0
    %633 = vmatpush1.msra.mxu0 %v567
    %634 = vmatprep.subr.mxu0 0.0
    %635 = vmatpush1.msra.mxu0 %v568
    %636 = vmatprep.subr.mxu0 0.0
    %637 = vmatpush1.msra.mxu0 %v569
    %638 = vmatprep.subr.mxu0 0.0
    %639 = vmatpush1.msra.mxu0 %v570
    %640 = vmatprep.subr.mxu0 0.0
    %641 = vmatpush1.msra.mxu0 %v571
    %642 = vmatprep.subr.mxu0 0.0
    %643 = vmatpush1.msra.mxu0 %v572
    %644 = vmatprep.subr.mxu0 0.0
    %645 = vmatpush1.msra.mxu0 %v573
    %646 = vmatprep.subr.mxu0 0.0
    %647 = vmatpush1.msra.mxu0 %v574
    %648 = vmatprep.subr.mxu0 0.0
    %649 = vmatpush1.msra.mxu0 %v575
    %650 = vmatprep.subr.mxu0 0.0
    %651 = vmatpush1.msra.mxu0 %v576
    %652 = vmatprep.subr.mxu0 0.0
    %653 = vmatpush1.msra.mxu0 %v577
    %654 = vmatprep.subr.mxu0 0.0
    %655 = vmatpush1.msra.mxu0 %v578
    %656 = vmatprep.subr.mxu0 0.0
    %657 = vmatpush1.msra.mxu0 %v579
    %658 = vmatprep.subr.mxu0 0.0
    %659 = vmatpush1.msra.mxu0 %v580
    %660 = vmatprep.subr.mxu0 0.0
    %661 = vmatpush1.msra.mxu0 %v581
    %662 = vmatprep.subr.mxu0 0.0
    %663 = vmatpush1.msra.mxu0 %v582
    %664 = vmatprep.subr.mxu0 0.0
    %665 = vmatpush1.msra.mxu0 %v583
    %666 = vmatprep.subr.mxu0 0.0
    %667 = vmatpush1.msra.mxu0 %v584
    %668 = vmatprep.subr.mxu0 0.0
    %669 = vmatpush1.msra.mxu0 %v585
    %670 = vmatprep.subr.mxu0 0.0
    %671 = vmatpush1.msra.mxu0 %v586
    %672 = vmatprep.subr.mxu0 0.0
    %673 = vmatpush1.msra.mxu0 %v587
    %674 = vmatprep.subr.mxu0 0.0
    %675 = vmatpush1.msra.mxu0 %v588
    %676 = vmatprep.subr.mxu0 0.0
    %677 = vmatpush1.msra.mxu0 %v589
    %678 = vmatprep.subr.mxu0 0.0
    %679 = vmatpush1.msra.mxu0 %v590
    %680 = vmatprep.subr.mxu0 0.0
    %681 = vmatpush1.msra.mxu0 %v591
    %682 = vmatprep.subr.mxu0 0.0
    %683 = vmatpush1.msra.mxu0 %v592
    %684 = vmatprep.subr.mxu0 0.0
    %685 = vmatpush1.msra.mxu0 %v593
    %686 = vmatprep.subr.mxu0 0.0
    %687 = vmatpush1.msra.mxu0 %v594
    %688 = vmatprep.subr.mxu0 0.0
    %689 = vmatpush1.msra.mxu0 %v595
    %690 = vmatprep.subr.mxu0 0.0
    %691 = vmatpush1.msra.mxu0 %v596
    %692 = vmatprep.subr.mxu0 0.0
    %693 = vmatpush1.msra.mxu0 %v597
    %694 = vmatprep.mubr.f32.mxu0 %v563
    %695 = vmatmul.mubr.f32.gmra.mrb[0].mxu0 %v562
    %v696 = vpop.f32.mrb[0].mxu0
    %v697 = vadd.f32 0.0, %v696
    %v698 = vpop.f32.mrb[0].mxu0
    %699 = vdwg.mxu0
    %700 = vmatprep.subr.mxu0 0.0
    %701 = vmatpush1.msra.mxu0 %v598
    %702 = vmatprep.subr.mxu0 0.0
    %703 = vmatpush1.msra.mxu0 %v599
    %704 = vmatprep.subr.mxu0 0.0
    %705 = vmatpush1.msra.mxu0 %v600
    %706 = vmatprep.subr.mxu0 0.0
    %707 = vmatpush1.msra.mxu0 %v601
    %708 = vmatprep.subr.mxu0 0.0
    %709 = vmatpush1.msra.mxu0 %v602
    %710 = vmatprep.subr.mxu0 0.0
    %711 = vmatpush1.msra.mxu0 %v603
    %712 = vmatprep.subr.mxu0 0.0
    %713 = vmatpush1.msra.mxu0 %v604
    %714 = vmatprep.subr.mxu0 0.0
    %715 = vmatpush1.msra.mxu0 %v605
    %716 = vmatprep.subr.mxu0 0.0
    %717 = vmatpush1.msra.mxu0 %v606
    %718 = vmatprep.subr.mxu0 0.0
    %719 = vmatpush1.msra.mxu0 %v607
    %720 = vmatprep.subr.mxu0 0.0
    %721 = vmatpush1.msra.mxu0 %v608
    %722 = vmatprep.subr.mxu0 0.0
    %723 = vmatpush1.msra.mxu0 %v609
    %724 = vmatprep.subr.mxu0 0.0
    %725 = vmatpush1.msra.mxu0 %v610
    %726 = vmatprep.subr.mxu0 0.0
    %727 = vmatpush1.msra.mxu0 %v611
    %728 = vmatprep.subr.mxu0 0.0
    %729 = vmatpush1.msra.mxu0 %v612
    %730 = vmatprep.subr.mxu0 0.0
    %731 = vmatpush1.msra.mxu0 %v613
    %732 = vmatprep.subr.mxu0 0.0
    %733 = vmatpush1.msra.mxu0 %v614
    %734 = vmatprep.subr.mxu0 0.0
    %735 = vmatpush1.msra.mxu0 %v615
    %736 = vmatprep.subr.mxu0 0.0
    %737 = vmatpush1.msra.mxu0 %v616
    %738 = vmatprep.subr.mxu0 0.0
    %739 = vmatpush1.msra.mxu0 %v617
    %740 = vmatprep.subr.mxu0 0.0
    %741 = vmatpush1.msra.mxu0 %v618
    %742 = vmatprep.subr.mxu0 0.0
    %743 = vmatpush1.msra.mxu0 %v619
    %744 = vmatprep.subr.mxu0 0.0
    %745 = vmatpush1.msra.mxu0 %v620
    %746 = vmatprep.subr.mxu0 0.0
    %747 = vmatpush1.msra.mxu0 %v621
    %748 = vmatprep.subr.mxu0 0.0
    %749 = vmatpush1.msra.mxu0 %v622
    %750 = vmatprep.subr.mxu0 0.0
    %751 = vmatpush1.msra.mxu0 %v623
    %752 = vmatprep.subr.mxu0 0.0
    %753 = vmatpush1.msra.mxu0 %v624
    %754 = vmatprep.subr.mxu0 0.0
    %755 = vmatpush1.msra.mxu0 %v625
    %756 = vmatprep.subr.mxu0 0.0
    %757 = vmatpush1.msra.mxu0 %v626
    %758 = vmatprep.subr.mxu0 0.0
    %759 = vmatpush1.msra.mxu0 %v627
    %760 = vmatprep.subr.mxu0 0.0
    %761 = vmatpush1.msra.mxu0 %v628
    %762 = vmatprep.subr.mxu0 0.0
    %763 = vmatpush1.msra.mxu0 %v629
    %764 = vmatprep.mubr.f32.mxu0 %v565
    %765 = vmatmul.mubr.f32.gmra.mrb[0].mxu0 %v564
    %v766 = vpop.f32.mrb[0].mxu0
    %v767 = vadd.f32 %v697, %v766
    %v768 = vpop.f32.mrb[0].mxu0
    %769 = vdwg.mxu0
    %770 = vst [vmem:[#allocation7] sm:$0xff] %v767
    // Predicated region
    $region42: #{tpu_custom_call.1} parent=1 // pred_check
      _
    $region43: #{tpu_custom_call.1} parent=1 // pred_check_branch
      %772 = sbr.rel (0) target = $region45
    $region44: #{tpu_custom_call.1} parent=1 // pred_region
      %s774 = ssub.s32 128, 128
      %775 = vsyncadd [#allocation4], %s774
      %s777 = sshll.u32 [#allocation7], 4
      %s778 = int_to_ptr.vmem [resolvable:$true] %s777
      %780 = dma.vmem_to_hbm [thread:$0]  %s778, 128, %s8, [#allocation4]
    $region45: #{tpu_custom_call.1} parent=1 // pred_fallthru
      _
    // Predicated region
    $region46: #{tpu_custom_call.1} parent=1 // pred_check
      _
    $region47: #{tpu_custom_call.1} parent=1 // pred_check_branch
      %782 = sbr.rel (0) target = $region49
    $region48: #{tpu_custom_call.1} parent=1 // pred_region
      %783 = dma.done [#allocation4], 128
    $region49: #{tpu_custom_call.1} parent=1 // pred_fallthru
      _
    %784 = vsyncpa [#allocation3], 1
    %785 = vsyncpa [#allocation6], 1
    %786 = vsyncpa [#allocation4], 1

</llo_original>
